<compile_context>
chip_gen: v6e
topology: v6e:2x2x1
jax: 0.10.0
libtpu: 0.0.40
codegen_flags: <defaults>
</compile_context>

<pallas_src>
import jax
import jax.numpy as jnp
from jax.experimental import pallas as pl
from jax.experimental.pallas import tpu as pltpu

EPS = 1e-5


def _round_up(x, m):
    return ((x + m - 1) // m) * m


def _layer_call(x_rows, w, b, scale, shift, *, collect_stats, tile_m,
                m_valid, matmul_dtype):
    """One conv layer: [folded BN + ReLU of previous layer] -> x @ W + b,
    optionally emitting per-tile (sum, sumsq) partials for this layer's BN."""
    M_pad, c_in = x_rows.shape
    c_out = w.shape[1]
    num_tiles = M_pad // tile_m
    apply_bn = scale is not None
    need_mask = collect_stats and (m_valid != M_pad)

    def kernel(*refs):
        i = 0
        x_ref = refs[i]; i += 1
        if apply_bn:
            scale_ref, shift_ref = refs[i], refs[i + 1]; i += 2
        w_ref, b_ref = refs[i], refs[i + 1]; i += 2
        h_ref = refs[i]; i += 1
        if collect_stats:
            sum_ref, sq_ref = refs[i], refs[i + 1]

        x = x_ref[...]
        if apply_bn:
            # folded BatchNorm (precomputed scale/shift) + ReLU: mul/add/max
            x = jnp.maximum(x * scale_ref[...] + shift_ref[...], 0.0)
        h = jnp.dot(x.astype(matmul_dtype), w_ref[...],
                    preferred_element_type=jnp.float32) + b_ref[...]
        h_ref[...] = h

        if collect_stats:
            hs = h
            if need_mask:
                rows = (pl.program_id(0) * tile_m
                        + jax.lax.broadcasted_iota(jnp.int32, h.shape, 0))
                hs = jnp.where(rows < m_valid, h, 0.0)
            s = jnp.sum(hs, axis=0, keepdims=True)            # (1, c_out)
            sq = jnp.sum(hs * hs, axis=0, keepdims=True)      # (1, c_out)
            sum_ref[...] = jnp.broadcast_to(s, (8, c_out)).reshape(1, 8, c_out)
            sq_ref[...] = jnp.broadcast_to(sq, (8, c_out)).reshape(1, 8, c_out)

    in_arrays = [x_rows]
    in_specs = [pl.BlockSpec((tile_m, c_in), lambda i: (i, 0))]
    if apply_bn:
        in_arrays += [scale, shift]
        in_specs += [pl.BlockSpec((1, c_in), lambda i: (0, 0)),
                     pl.BlockSpec((1, c_in), lambda i: (0, 0))]
    in_arrays += [w.astype(matmul_dtype), b]
    in_specs += [pl.BlockSpec((c_in, c_out), lambda i: (0, 0)),
                 pl.BlockSpec((1, c_out), lambda i: (0, 0))]

    out_shape = [jax.ShapeDtypeStruct((M_pad, c_out), jnp.float32)]
    out_specs = [pl.BlockSpec((tile_m, c_out), lambda i: (i, 0))]
    if collect_stats:
        stats_shape = jax.ShapeDtypeStruct((num_tiles, 8, c_out), jnp.float32)
        stats_spec = pl.BlockSpec((1, 8, c_out), lambda i: (i, 0, 0))
        out_shape += [stats_shape, stats_shape]
        out_specs += [stats_spec, stats_spec]

    results = pl.pallas_call(
        kernel,
        grid=(num_tiles,),
        in_specs=in_specs,
        out_specs=out_specs,
        out_shape=out_shape,
        compiler_params=pltpu.CompilerParams(
            dimension_semantics=("parallel",),
            vmem_limit_bytes=48 * 1024 * 1024),
    )(*in_arrays)

    if collect_stats:
        return results[0], results[1], results[2]
    return results[0]


def _fold_bn(sums, sqs, gamma, beta, m):
    """Global training-mode BatchNorm (biased variance) folded into a
    per-channel scale/shift, from per-tile partial sums."""
    s = jnp.sum(sums[:, 0, :], axis=0)                 # (C,)
    sq = jnp.sum(sqs[:, 0, :], axis=0)                 # (C,)
    mean = s / m
    var = jnp.maximum(sq / m - mean * mean, 0.0)       # single-pass variance
    inv = jax.lax.rsqrt(var + EPS)
    scale = gamma * inv                                # (1, C)
    shift = beta - mean * scale                        # (1, C)
    return scale, shift


def atlasnet_tn_forward(x, params, *, tile_m=1024, matmul_dtype=jnp.float32):
    """Mirrors AtlasNetTargetNetwork.forward semantics.

    x: (B, L, 5) or (B, 5, L) or (L, 5)   (PyTorch axis handling reproduced)
    returns: (B, L, 3)
    """
    input_size = 5
    if x.ndim == 2:
        x = x[None, :, :]
    if x.shape[-2] != input_size:
        x = jnp.swapaxes(x, -2, -1)                    # -> (B, 5, L)
    B, _, L = x.shape
    M = B * L
    x_rows = jnp.swapaxes(x, 1, 2).reshape(M, input_size).astype(jnp.float32)

    tile = _round_up(min(tile_m, _round_up(M, 8)), 8)
    M_pad = _round_up(M, tile)
    if M_pad != M:
        x_rows = jnp.pad(x_rows, ((0, M_pad - M), (0, 0)))

    h = x_rows
    scale = shift = None
    for i in range(4):
        w, b, g, be = params[4 * i: 4 * i + 4]
        h, sums, sqs = _layer_call(h, w, b, scale, shift, collect_stats=True,
                                   tile_m=tile, m_valid=M,
                                   matmul_dtype=matmul_dtype)
        scale, shift = _fold_bn(sums, sqs, g, be, M)
    w5, b5 = params[16], params[17]
    out = _layer_call(h, w5, b5, scale, shift, collect_stats=False,
                      tile_m=tile, m_valid=M, matmul_dtype=matmul_dtype)
    return out[:M].reshape(B, L, 3)


def build_params(key, input_size=5, bottleneck=128, hidden=64, num_layers=2):
    """Deterministically build the flat `weights` vector and slice it exactly
    the way AtlasNetTargetNetwork._get_layer_data does."""
    chans = [input_size, bottleneck, hidden] + [hidden] * num_layers + [3]
    total = 0
    for i in range(len(chans) - 1):
        cin, cout = chans[i], chans[i + 1]
        total += cout * cin + cout            # conv weight + bias
        if i < len(chans) - 2:                # BN gamma + beta (not after last)
            total += 2 * cout
    flat = 0.1 * jax.random.normal(key, (total,), dtype=jnp.float32)

    params = []
    idx = 0
    for i in range(len(chans) - 1):
        cin, cout = chans[i], chans[i + 1]
        w = flat[idx: idx + cout * cin].reshape(cout, cin, 1)  # torch conv1d layout
        idx += cout * cin
        b = flat[idx: idx + cout]
        idx += cout
        params.append(jnp.transpose(w[:, :, 0], (1, 0)))       # (cin, cout)
        params.append(b.reshape(1, cout))
        if i < len(chans) - 2:
            gamma = flat[idx: idx + cout]; idx += cout
            beta = flat[idx: idx + cout]; idx += cout
            params.append(gamma.reshape(1, cout))
            params.append(beta.reshape(1, cout))
    assert idx == total
    return params


def reference_forward(x, params):
    """Plain-JAX reference reproducing the module math (for verification)."""
    input_size = 5
    if x.ndim == 2:
        x = x[None, :, :]
    if x.shape[-2] != input_size:
        x = jnp.swapaxes(x, -2, -1)
    B, _, L = x.shape
    h = jnp.swapaxes(x, 1, 2).reshape(B * L, input_size).astype(jnp.float32)
    for i in range(4):
        w, b, g, be = params[4 * i: 4 * i + 4]
        h = h @ w + b
        mean = jnp.mean(h, axis=0, keepdims=True)
        var = jnp.mean((h - mean) ** 2, axis=0, keepdims=True)
        h = (h - mean) * jax.lax.rsqrt(var + EPS) * g + be
        h = jnp.maximum(h, 0.0)
    w, b = params[16], params[17]
    h = h @ w + b
    return h.reshape(B, L, 3)


# NOTE: F.batch_norm's in-place running_mean/var update (momentum 0.1) is a
# side effect that the module never reads in forward(), so it is omitted.

if __name__ == "__main__":
    key = jax.random.PRNGKey(0)
    kw, kx = jax.random.split(key)
    # Small demo config (real defaults are bottleneck=1024, hidden=512).
    params = build_params(kw, input_size=5, bottleneck=128, hidden=64,
                          num_layers=2)

    # Test 1: single-tile path (batch=2, 16 points, 5 input features).
    x = jax.random.normal(kx, (2, 16, 5), dtype=jnp.float32)
    out = jax.block_until_ready(atlasnet_tn_forward(x, params))
    ref = reference_forward(x, params)
    assert out.shape == (2, 16, 3)
    assert jnp.allclose(out, ref, atol=5e-4, rtol=5e-4), "f32 mismatch (single tile)"

    # Test 2: multi-tile path with a ragged last tile (exercises tiled BN
    # partial sums + padded-row masking).
    kx2 = jax.random.fold_in(kx, 1)
    x2 = jax.random.normal(kx2, (2, 200, 5), dtype=jnp.float32)
    out2 = jax.block_until_ready(atlasnet_tn_forward(x2, params, tile_m=64))
    ref2 = reference_forward(x2, params)
    assert out2.shape == (2, 200, 3)
    assert jnp.allclose(out2, ref2, atol=5e-4, rtol=5e-4), "f32 mismatch (multi tile)"

    # Test 3: bf16 matmul operands (v6e/v7x recommendation); BN math stays f32.
    out_bf16 = jax.block_until_ready(
        atlasnet_tn_forward(x, params, matmul_dtype=jnp.bfloat16))
    assert out_bf16.shape == (2, 16, 3)
    assert float(jnp.max(jnp.abs(out_bf16 - ref))) < 0.1, "bf16 path diverged"

    print("KERNEL_OK")
</pallas_src>

<mosaic_0001>
module attributes {stable_mosaic.version = 11 : i64} {
  func.func @kernel(%arg0: i32, %arg1: memref<32x5xf32, #tpu.memory_space<vmem>>, %arg2: memref<5x128xf32, #tpu.memory_space<vmem>>, %arg3: memref<1x128xf32, #tpu.memory_space<vmem>>, %arg4: memref<32x128xf32, #tpu.memory_space<vmem>>, %arg5: memref<1x8x128xf32, #tpu.memory_space<vmem>>, %arg6: memref<1x8x128xf32, #tpu.memory_space<vmem>>) attributes {dimension_semantics = [#tpu.dimension_semantics<parallel>], iteration_bounds = array<i64: 1>, scalar_prefetch = 0 : i64, scratch_operands = 0 : i64, tpu.core_type = #tpu.core_type<tc>, window_params = [{transform_indices = @transform_0, window_bounds = array<i64: 32, 5>}, {pipeline_mode = #tpu.pipeline_mode<synchronous>, transform_indices = @transform_1, window_bounds = array<i64: 5, 128>}, {pipeline_mode = #tpu.pipeline_mode<synchronous>, transform_indices = @transform_2, window_bounds = array<i64: 1, 128>}, {transform_indices = @transform_3, window_bounds = array<i64: 32, 128>}, {transform_indices = @transform_4, window_bounds = array<i64: 1, 8, 128>}, {transform_indices = @transform_5, window_bounds = array<i64: 1, 8, 128>}]} {
    %c0 = arith.constant 0 : index
    %c0_0 = arith.constant 0 : index
    %0 = vector.load %arg1[%c0, %c0_0] : memref<32x5xf32, #tpu.memory_space<vmem>>, vector<32x5xf32>
    %c0_1 = arith.constant 0 : index
    %c0_2 = arith.constant 0 : index
    %1 = vector.load %arg2[%c0_1, %c0_2] : memref<5x128xf32, #tpu.memory_space<vmem>>, vector<5x128xf32>
    %cst = arith.constant dense<0.000000e+00> : vector<32x128xf32>
    %2 = tpu.matmul %0, %1, %cst {dimension_numbers = #tpu.dot_dimension_numbers<[1], [0], [0], [1], [0, 0, 1, 1], [], []>} : vector<32x5xf32>, vector<5x128xf32>, vector<32x128xf32> -> vector<32x128xf32>
    %c0_3 = arith.constant 0 : index
    %c0_4 = arith.constant 0 : index
    %3 = vector.load %arg3[%c0_3, %c0_4] : memref<1x128xf32, #tpu.memory_space<vmem>>, vector<1x128xf32>
    %4 = vector.broadcast %3 : vector<1x128xf32> to vector<32x128xf32>
    %5 = arith.addf %2, %4 : vector<32x128xf32>
    %c0_5 = arith.constant 0 : index
    %c0_6 = arith.constant 0 : index
    %6 = vector.load %arg4[%c0_5, %c0_6] : memref<32x128xf32, #tpu.memory_space<vmem>>, vector<32x128xf32>
    tpu.vector_store %arg4[%c0_5, %c0_6], %5 {strides = array<i32>} : memref<32x128xf32, #tpu.memory_space<vmem>>, vector<32x128xf32>,
    %cst_7 = arith.constant dense<0.000000e+00> : vector<128xf32>
    %7 = vector.multi_reduction <add>, %5, %cst_7 [0] : vector<32x128xf32> to vector<128xf32>
    %8 = vector.shape_cast %7 : vector<128xf32> to vector<1x128xf32>
    %9 = arith.mulf %5, %5 : vector<32x128xf32>
    %cst_8 = arith.constant dense<0.000000e+00> : vector<128xf32>
    %10 = vector.multi_reduction <add>, %9, %cst_8 [0] : vector<32x128xf32> to vector<128xf32>
    %11 = vector.shape_cast %10 : vector<128xf32> to vector<1x128xf32>
    %12 = vector.shape_cast %8 : vector<1x128xf32> to vector<1x128xf32>
    %13 = vector.broadcast %12 : vector<1x128xf32> to vector<8x128xf32>
    %14 = vector.shape_cast %13 : vector<8x128xf32> to vector<1x8x128xf32>
    %c0_9 = arith.constant 0 : index
    %c0_10 = arith.constant 0 : index
    %c0_11 = arith.constant 0 : index
    %15 = vector.load %arg5[%c0_9, %c0_10, %c0_11] : memref<1x8x128xf32, #tpu.memory_space<vmem>>, vector<1x8x128xf32>
    tpu.vector_store %arg5[%c0_9, %c0_10, %c0_11], %14 {strides = array<i32>} : memref<1x8x128xf32, #tpu.memory_space<vmem>>, vector<1x8x128xf32>,
    %16 = vector.shape_cast %11 : vector<1x128xf32> to vector<1x128xf32>
    %17 = vector.broadcast %16 : vector<1x128xf32> to vector<8x128xf32>
    %18 = vector.shape_cast %17 : vector<8x128xf32> to vector<1x8x128xf32>
    %c0_12 = arith.constant 0 : index
    %c0_13 = arith.constant 0 : index
    %c0_14 = arith.constant 0 : index
    %19 = vector.load %arg6[%c0_12, %c0_13, %c0_14] : memref<1x8x128xf32, #tpu.memory_space<vmem>>, vector<1x8x128xf32>
    tpu.vector_store %arg6[%c0_12, %c0_13, %c0_14], %18 {strides = array<i32>} : memref<1x8x128xf32, #tpu.memory_space<vmem>>, vector<1x8x128xf32>,
    return
  }
  func.func @transform_0(%arg0: i32) -> (i32, i32) {
    %c0_i32 = arith.constant 0 : i32
    %c0_i32_0 = arith.constant 0 : i32
    return %arg0, %c0_i32 : i32, i32
  }
  func.func @transform_1(%arg0: i32) -> (i32, i32) {
    %c0_i32 = arith.constant 0 : i32
    %c0_i32_0 = arith.constant 0 : i32
    %c0_i32_1 = arith.constant 0 : i32
    return %c0_i32, %c0_i32_0 : i32, i32
  }
  func.func @transform_2(%arg0: i32) -> (i32, i32) {
    %c0_i32 = arith.constant 0 : i32
    %c0_i32_0 = arith.constant 0 : i32
    %c0_i32_1 = arith.constant 0 : i32
    return %c0_i32, %c0_i32_0 : i32, i32
  }
  func.func @transform_3(%arg0: i32) -> (i32, i32) {
    %c0_i32 = arith.constant 0 : i32
    %c0_i32_0 = arith.constant 0 : i32
    return %arg0, %c0_i32 : i32, i32
  }
  func.func @transform_4(%arg0: i32) -> (i32, i32, i32) {
    %c0_i32 = arith.constant 0 : i32
    %c0_i32_0 = arith.constant 0 : i32
    %c0_i32_1 = arith.constant 0 : i32
    return %arg0, %c0_i32, %c0_i32_0 : i32, i32, i32
  }
  func.func @transform_5(%arg0: i32) -> (i32, i32, i32) {
    %c0_i32 = arith.constant 0 : i32
    %c0_i32_0 = arith.constant 0 : i32
    %c0_i32_1 = arith.constant 0 : i32
    return %arg0, %c0_i32, %c0_i32_0 : i32, i32, i32
  }
}

</mosaic_0001>

<llo_original>
// kernel: tpu_custom_call.1
$region0: #{tpu_custom_call.1}
  #allocation0 [shape = 'u32[]', space=smem, size = 0x4, offset = 0x4, fixed_abs, tag = 'smem constant byte address 0x4 - core index']
  #allocation1 [shape = 'u32[144,128]{1,0:T(1,128)}', space=vmem, size = 0x12000, scoped, tag = 'internal scratch']
  %s0 = inlined_call_operand.vmem [shape: f32[32,5], index: 0, kind: input, shape index: {}]
  %s1 = inlined_call_operand.vmem [shape: f32[5,128], index: 1, kind: input, shape index: {}]
  %s2 = inlined_call_operand.vmem [shape: f32[1,128], index: 2, kind: input, shape index: {}]
  %s3 = inlined_call_operand.hbm [shape: f32[32,128], index: 3, kind: output, shape index: {0}]
  %s4 = inlined_call_operand.hbm [shape: f32[1,8,128], index: 4, kind: output, shape index: {1}]
  %s5 = inlined_call_operand.hbm [shape: f32[1,8,128], index: 5, kind: output, shape index: {2}]
  %6 = xla_tuple %s3, %s4, %s5
  %s7 = sld [smem:[#allocation0]]
  $region38: #{tpu_custom_call.1} parent=0
    _
  %s9 = ssub.s32 1, %s7
  %s10 = scalar_select 0, %s9, %s7
  $region1: #{tpu_custom_call.1} parent=0
    #allocation2 [shape = 'u8[16384]{0}', space=vmem, size = 0x4000, scoped, tag = 'output window, operand 0, single buffered']
    #allocation3 [shape = 's32[1]{0}', space=sflag, size = 0x4, scoped, tag = 'scoped memory for tpu_custom_call.1']
    #allocation4 [shape = 'u8[4096]{0}', space=vmem, size = 0x1000, scoped, tag = 'output window, operand 1, single buffered']
    #allocation5 [shape = 's32[1]{0}', space=sflag, size = 0x4, scoped, tag = 'scoped memory for tpu_custom_call.1']
    #allocation6 [shape = 'u8[4096]{0}', space=vmem, size = 0x1000, scoped, tag = 'output window, operand 2, single buffered']
    %11 = vsyncpa [#allocation3], 0
    %12 = vsyncpa [#allocation5], 0
    // Predicated region
    $region2: #{tpu_custom_call.1} parent=1 // pred_check
      _
    $region3: #{tpu_custom_call.1} parent=1 // pred_check_branch
      %14 = sbr.rel (0) target = $region5
    $region4: #{tpu_custom_call.1} parent=1 // pred_region
      _
    $region5: #{tpu_custom_call.1} parent=1 // pred_fallthru
      _
    // Predicated region
    $region6: #{tpu_custom_call.1} parent=1 // pred_check
      _
    $region7: #{tpu_custom_call.1} parent=1 // pred_check_branch
      %16 = sbr.rel (0) target = $region9
    $region8: #{tpu_custom_call.1} parent=1 // pred_region
      _
    $region9: #{tpu_custom_call.1} parent=1 // pred_fallthru
      _
    // Predicated region
    $region10: #{tpu_custom_call.1} parent=1 // pred_check
      _
    $region11: #{tpu_custom_call.1} parent=1 // pred_check_branch
      %18 = sbr.rel (0) target = $region13
    $region12: #{tpu_custom_call.1} parent=1 // pred_region
      _
    $region13: #{tpu_custom_call.1} parent=1 // pred_fallthru
      _
    %v19 = vld [vmem:[%s0] sm:$0xff]
    %v20 = vld [vmem:[%s0 + $0x8] sm:$0xff]
    %v21 = vld [vmem:[%s0 + $0x10] sm:$0xff]
    %v22 = vld [vmem:[%s0 + $0x18] sm:$0xff]
    %v23 = vld [vmem:[%s1] sm:$0x1f]
    %v24 = vld [vmem:[%s2] sm:$0x1]
    %v26 = vlaneseq
    %v27 = vshrl.u32 %v26, 7
    %v28 = vsub.s32 0, %v27
    %v29 = vrot.slane %v24, %v28
    %vm31 = vcmask 39936
    %v33 = vsel %vm31, %v19, 0
    %v36 = vsel %vm31, %v20, 0
    %v39 = vsel %vm31, %v21, 0
    %v42 = vsel %vm31, %v22, 0
    %vm44 = vcmask 1044480
    %v46 = vsel %vm44, %v23, 0
    %48 = vmatprep.subr.mxu0 0.0
    %49 = vmatpush1.msra.mxu0 0.0
    %50 = vmatprep.subr.mxu0 0.0
    %51 = vmatpush1.msra.mxu0 0.0
    %52 = vmatprep.subr.mxu0 0.0
    %53 = vmatpush1.msra.mxu0 0.0
    %54 = vmatprep.subr.mxu0 0.0
    %55 = vmatpush1.msra.mxu0 0.0
    %56 = vmatprep.subr.mxu0 0.0
    %57 = vmatpush1.msra.mxu0 0.0
    %58 = vmatprep.subr.mxu0 0.0
    %59 = vmatpush1.msra.mxu0 0.0
    %60 = vmatprep.subr.mxu0 0.0
    %61 = vmatpush1.msra.mxu0 0.0
    %62 = vmatprep.subr.mxu0 0.0
    %63 = vmatpush1.msra.mxu0 0.0
    %64 = vmatprep.subr.mxu0 0.0
    %65 = vmatpush1.msra.mxu0 0.0
    %66 = vmatprep.subr.mxu0 0.0
    %67 = vmatpush1.msra.mxu0 0.0
    %68 = vmatprep.subr.mxu0 0.0
    %69 = vmatpush1.msra.mxu0 0.0
    %70 = vmatprep.subr.mxu0 0.0
    %71 = vmatpush1.msra.mxu0 0.0
    %72 = vmatprep.subr.mxu0 0.0
    %73 = vmatpush1.msra.mxu0 0.0
    %74 = vmatprep.subr.mxu0 0.0
    %75 = vmatpush1.msra.mxu0 0.0
    %76 = vmatprep.subr.mxu0 0.0
    %77 = vmatpush1.msra.mxu0 0.0
    %78 = vmatprep.subr.mxu0 0.0
    %79 = vmatpush1.msra.mxu0 %v46
    %80 = vmatprep.subr.mxu0 0.0
    %81 = vmatpush2.msra.mxu0 0.0
    %82 = vmatprep.subr.mxu0 0.0
    %83 = vmatpush2.msra.mxu0 0.0
    %84 = vmatprep.subr.mxu0 0.0
    %85 = vmatpush2.msra.mxu0 0.0
    %86 = vmatprep.subr.mxu0 0.0
    %87 = vmatpush2.msra.mxu0 0.0
    %88 = vmatprep.subr.mxu0 0.0
    %89 = vmatpush2.msra.mxu0 0.0
    %90 = vmatprep.subr.mxu0 0.0
    %91 = vmatpush2.msra.mxu0 0.0
    %92 = vmatprep.subr.mxu0 0.0
    %93 = vmatpush2.msra.mxu0 0.0
    %94 = vmatprep.subr.mxu0 0.0
    %95 = vmatpush2.msra.mxu0 0.0
    %96 = vmatprep.subr.mxu0 0.0
    %97 = vmatpush2.msra.mxu0 0.0
    %98 = vmatprep.subr.mxu0 0.0
    %99 = vmatpush2.msra.mxu0 0.0
    %100 = vmatprep.subr.mxu0 0.0
    %101 = vmatpush2.msra.mxu0 0.0
    %102 = vmatprep.subr.mxu0 0.0
    %103 = vmatpush2.msra.mxu0 0.0
    %104 = vmatprep.subr.mxu0 0.0
    %105 = vmatpush2.msra.mxu0 0.0
    %106 = vmatprep.subr.mxu0 0.0
    %107 = vmatpush2.msra.mxu0 0.0
    %108 = vmatprep.subr.mxu0 0.0
    %109 = vmatpush2.msra.mxu0 0.0
    %110 = vmatprep.subr.mxu0 0.0
    %111 = vmatpush2.msra.mxu0 0.0
    %112 = vmatprep.mubr.f32.mxu0 0.0
    %113 = vmatmul.mubr.f32.gmra.mxu0 %v33
    %v114 = vpop.f32.mrf.mxu0
    %v115 = vadd.f32 %v29, %v114
    %v116 = vpop.f32.mrf.mxu0
    %117 = vmatprep.mubr.f32.mxu0 0.0
    %118 = vmatmul.mubr.f32.gmra.mxu0 %v36
    %v119 = vpop.f32.mrf.mxu0
    %v120 = vadd.f32 %v29, %v119
    %v121 = vpop.f32.mrf.mxu0
    %122 = vmatprep.mubr.f32.mxu0 0.0
    %123 = vmatmul.mubr.f32.gmra.mxu0 %v39
    %v124 = vpop.f32.mrf.mxu0
    %v125 = vadd.f32 %v29, %v124
    %v126 = vpop.f32.mrf.mxu0
    %127 = vmatprep.mubr.f32.mxu0 0.0
    %128 = vmatmul.mubr.f32.gmra.mxu0 %v42
    %v129 = vpop.f32.mrf.mxu0
    %v130 = vadd.f32 %v29, %v129
    %v131 = vpop.f32.mrf.mxu0
    %132 = vdwg.mxu0
    %133 = vst [vmem:[#allocation2] sm:$0xff] %v115
    %134 = vst [vmem:[#allocation2 + $0x8] sm:$0xff] %v120
    %135 = vst [vmem:[#allocation2 + $0x10] sm:$0xff] %v125
    %136 = vst [vmem:[#allocation2 + $0x18] sm:$0xff] %v130
    %v137 = vadd.f32 %v115, %v120
    %v138 = vadd.f32 %v137, %v125
    %v139 = vadd.f32 %v138, %v130
    %v140 = vrot.slane %v139, 4
    %v141 = vadd.f32 %v139, %v140
    %v142 = vrot.slane %v141, 2
    %v143 = vadd.f32 %v141, %v142
    %v144 = vrot.slane %v143, 1
    %v145 = vadd.f32 %v143, %v144
    %v146 = vmul.f32 %v115, %v115
    %v147 = vmul.f32 %v120, %v120
    %v148 = vmul.f32 %v125, %v125
    %v149 = vmul.f32 %v130, %v130
    %v150 = vadd.f32 %v146, %v147
    %v151 = vadd.f32 %v150, %v148
    %v152 = vadd.f32 %v151, %v149
    %v153 = vrot.slane %v152, 4
    %v154 = vadd.f32 %v152, %v153
    %v155 = vrot.slane %v154, 2
    %v156 = vadd.f32 %v154, %v155
    %v157 = vrot.slane %v156, 1
    %v158 = vadd.f32 %v156, %v157
    %159 = vst [vmem:[#allocation4] sm:$0xff] %v145
    %160 = vst [vmem:[#allocation6] sm:$0xff] %v158
    // Predicated region
    $region14: #{tpu_custom_call.1} parent=1 // pred_check
      _
    $region15: #{tpu_custom_call.1} parent=1 // pred_check_branch
      %162 = sbr.rel (0) target = $region17
    $region16: #{tpu_custom_call.1} parent=1 // pred_region
      %s164 = ssub.s32 512, 512
      %165 = vsyncadd [#allocation3], %s164
      %s166 = sshll.u32 [#allocation2], 4
      %s167 = int_to_ptr.vmem [resolvable:$true] %s166
      %172 = dma.vmem_to_hbm [thread:$0]  %s167, 512, %s3, [#allocation3], 128, 128, 8
    $region17: #{tpu_custom_call.1} parent=1 // pred_fallthru
      _
    // Predicated region
    $region18: #{tpu_custom_call.1} parent=1 // pred_check
      _
    $region19: #{tpu_custom_call.1} parent=1 // pred_check_branch
      %174 = sbr.rel (0) target = $region21
    $region20: #{tpu_custom_call.1} parent=1 // pred_region
      %s176 = ssub.s32 128, 128
      %177 = vsyncadd [#allocation5], %s176
      %s179 = sshll.u32 [#allocation4], 4
      %s180 = int_to_ptr.vmem [resolvable:$true] %s179
      %182 = dma.vmem_to_hbm [thread:$0]  %s180, 128, %s4, [#allocation5]
    $region21: #{tpu_custom_call.1} parent=1 // pred_fallthru
      _
    // Predicated region
    $region22: #{tpu_custom_call.1} parent=1 // pred_check
      _
    $region23: #{tpu_custom_call.1} parent=1 // pred_check_branch
      %184 = sbr.rel (0) target = $region25
    $region24: #{tpu_custom_call.1} parent=1 // pred_region
      %s186 = ssub.s32 128, 128
      %187 = vsyncadd [#allocation5], %s186
      %s189 = sshll.u32 [#allocation6], 4
      %s190 = int_to_ptr.vmem [resolvable:$true] %s189
      %192 = dma.vmem_to_hbm [thread:$0]  %s190, 128, %s5, [#allocation5]
    $region25: #{tpu_custom_call.1} parent=1 // pred_fallthru
      _
    // Predicated region
    $region26: #{tpu_custom_call.1} parent=1 // pred_check
      _
    $region27: #{tpu_custom_call.1} parent=1 // pred_check_branch
      %194 = sbr.rel (0) target = $region29
    $region28: #{tpu_custom_call.1} parent=1 // pred_region
      %195 = dma.done [#allocation3], 512
    $region29: #{tpu_custom_call.1} parent=1 // pred_fallthru
      _
    // Predicated region
    $region30: #{tpu_custom_call.1} parent=1 // pred_check
      _
    $region31: #{tpu_custom_call.1} parent=1 // pred_check_branch
      %197 = sbr.rel (0) target = $region33
    $region32: #{tpu_custom_call.1} parent=1 // pred_region
      %198 = dma.done [#allocation5], 128
    $region33: #{tpu_custom_call.1} parent=1 // pred_fallthru
      _
    // Predicated region
    $region34: #{tpu_custom_call.1} parent=1 // pred_check
      _
    $region35: #{tpu_custom_call.1} parent=1 // pred_check_branch
      %200 = sbr.rel (0) target = $region37
    $region36: #{tpu_custom_call.1} parent=1 // pred_region
      %201 = dma.done [#allocation5], 128
    $region37: #{tpu_custom_call.1} parent=1 // pred_fallthru
      _
    %202 = vsyncpa [#allocation3], 1
    %203 = vsyncpa [#allocation5], 1

</llo_original>
